<compile_context>
chip_gen: v6e
topology: v6e:2x2x1
jax: 0.10.0
libtpu: 0.0.40
codegen_flags: <defaults>
</compile_context>

<pallas_src>
import functools
import math

import jax
import jax.numpy as jnp
from jax.experimental import pallas as pl
from jax.experimental.pallas import tpu as pltpu

NEG_SLOPE = 0.01  # torch.nn.LeakyReLU default


def _leaky(x):
    return jnp.where(x > 0, x, NEG_SLOPE * x)


def _round_up(x, m):
    return (x + m - 1) // m * m


def calculate_theta2(d):
    """Pure-Python port of the sympy/scipy calculate_theta2: thetas[t][k] = coeff of x^k."""
    fact = math.factorial
    thetas = []
    for i in range(d + 1):
        inv_beta = fact(d + 1) / (fact(i) * fact(d - i))        # 1 / B(i+1, d+1-i)
        coeffs = [0.0] * (d + 1)
        for j in range(d - i + 1):
            coeffs[i + j] += inv_beta * (0.5 ** i) * math.comb(d - i, j) * ((-0.5) ** j)
        thetas.append(coeffs)
    return thetas


def build_laplacian(adj):
    """Dense L = I - D_in^-1/2 A^T D_in^-1/2 (in-deg clamped >= 1), A[u,v]=1 for edge u->v."""
    n = adj.shape[0]
    d_inv = 1.0 / jnp.sqrt(jnp.maximum(adj.sum(axis=0), 1.0))
    a_hat = d_inv[:, None] * adj.T * d_inv[None, :]
    return jnp.eye(n, dtype=jnp.float32) - a_hat


# ---------------------------------------------------------------------------
# Kernel 1: tiled Y = L @ H  (the O(N^2) graph-propagation matmul)
# ---------------------------------------------------------------------------
def _l_matmul_kernel(l_ref, h_ref, o_ref, acc_ref):
    k = pl.program_id(1)

    @pl.when(k == 0)
    def _init():
        acc_ref[...] = jnp.zeros_like(acc_ref)

    # bf16 MXU inputs, f32 accumulation.
    acc_ref[...] += jnp.dot(l_ref[...], h_ref[...].astype(jnp.bfloat16),
                            preferred_element_type=jnp.float32)

    @pl.when(k == pl.num_programs(1) - 1)
    def _done():
        o_ref[...] = acc_ref[...]


def _l_apply(l_bf16, h, *, tile_m, tile_k):
    """Y = L @ H with L (Np,Np) bf16, H (Np,Hf) f32 -> (Np,Hf) f32."""
    # TODO(synk): exploit block sparsity of L via PrefetchScalarGridSpec
    #             (skip all-zero (tile_m, tile_k) tiles with pl.when).
    n, hf = h.shape
    cost = pl.CostEstimate(
        flops=2 * n * n * hf,
        transcendentals=0,
        bytes_accessed=n * n * 2 + 2 * n * hf * 4,
    )
    return pl.pallas_call(
        _l_matmul_kernel,
        out_shape=jax.ShapeDtypeStruct((n, hf), jnp.float32),
        grid=(n // tile_m, n // tile_k),
        in_specs=[
            pl.BlockSpec((tile_m, tile_k), lambda i, k: (i, k)),
            pl.BlockSpec((tile_k, hf), lambda i, k: (k, 0)),
        ],
        out_specs=pl.BlockSpec((tile_m, hf), lambda i, k: (i, 0)),
        scratch_shapes=[pltpu.VMEM((tile_m, hf), jnp.float32)],
        compiler_params=pltpu.CompilerParams(
            dimension_semantics=("parallel", "arbitrary")),
        cost_estimate=cost,
    )(l_bf16, h)


# ---------------------------------------------------------------------------
# Kernel 2: row-tiled dense layer  o = [leaky](  [leaky](x) @ W + b  )
# ---------------------------------------------------------------------------
def _dense_kernel(x_ref, w_ref, b_ref, o_ref, *, pre_leaky, post_leaky):
    x = x_ref[...]
    if pre_leaky:
        x = _leaky(x)
    y = jnp.dot(x, w_ref[...], preferred_element_type=jnp.float32) + b_ref[...]
    if post_leaky:
        y = _leaky(y)
    o_ref[...] = y


def _dense(x, w, b, *, tile_m, pre_leaky=False, post_leaky=False):
    n, fin = x.shape
    fout = w.shape[1]
    kern = functools.partial(_dense_kernel, pre_leaky=pre_leaky, post_leaky=post_leaky)
    return pl.pallas_call(
        kern,
        out_shape=jax.ShapeDtypeStruct((n, fout), jnp.float32),
        grid=(n // tile_m,),
        in_specs=[
            pl.BlockSpec((tile_m, fin), lambda i: (i, 0)),
            pl.BlockSpec((fin, fout), lambda i: (0, 0)),
            pl.BlockSpec((1, fout), lambda i: (0, 0)),
        ],
        out_specs=pl.BlockSpec((tile_m, fout), lambda i: (i, 0)),
        compiler_params=pltpu.CompilerParams(dimension_semantics=("parallel",)),
    )(x, w, b)


# ---------------------------------------------------------------------------
# Full forward
# ---------------------------------------------------------------------------
def bwgnn_hetero_forward(in_feat, laplacians, params, thetas,
                         *, tile_m=256, tile_k=512, out_lane_pad=128):
    n = in_feat.shape[0]
    h_feats = params["w1"].shape[1]
    num_classes = params["w4"].shape[1]
    kk = len(thetas)                         # K = d + 1 polynomial terms

    assert max(tile_m, tile_k) % min(tile_m, tile_k) == 0
    n_pad = _round_up(n, max(tile_m, tile_k))
    pad_r = n_pad - n

    # Zero-padding is exact: padded L rows/cols are zero, so real rows never see
    # the (garbage) padded activation rows; padded output rows are sliced away.
    x_p = jnp.pad(in_feat, ((0, pad_r), (0, 0)))
    l_p = [jnp.pad(l, ((0, pad_r), (0, pad_r))).astype(jnp.bfloat16) for l in laplacians]

    # Fold the theta combination into linear3's weights:
    #   concat_t(sum_k theta[t][k]*h_k) @ W3 == sum_k h_k @ (sum_t theta[t][k]*W3_t)
    w3 = params["w3"]
    w3_blocks = [w3[t * h_feats:(t + 1) * h_feats, :] for t in range(kk)]
    w3_eff = jnp.concatenate(
        [sum(thetas[t][k] * w3_blocks[t] for t in range(kk)) for k in range(kk)], axis=0)

    # Lane-dense classifier: zero-pad (H, C) -> (H, 128) and slice in the wrapper.
    c_pad = _round_up(num_classes, out_lane_pad)
    w4_p = jnp.zeros((h_feats, c_pad), jnp.float32).at[:, :num_classes].set(params["w4"])
    b4_p = jnp.zeros((1, c_pad), jnp.float32).at[:, :num_classes].set(params["b4"])

    # Input MLP.
    h = _dense(x_p, params["w1"], params["b1"], tile_m=tile_m, post_leaky=True)
    h = _dense(h, params["w2"], params["b2"], tile_m=tile_m, post_leaky=True)

    # Chained per-relation polynomial filtering + linear3.
    h_all = jnp.zeros((n_pad, h_feats), jnp.float32)
    for l_r in l_p:
        powers = [h]
        for _ in range(kk - 1):
            powers.append(_l_apply(l_r, powers[-1], tile_m=tile_m, tile_k=tile_k))
        h_cat = jnp.concatenate(powers, axis=1)              # (Np, K*H) glue concat
        h = _dense(h_cat, w3_eff, params["b3"], tile_m=tile_m)
        h_all = h_all + h

    out_pad = _dense(h_all, w4_p, b4_p, tile_m=tile_m, pre_leaky=True)
    return out_pad[:n, :num_classes]


# ---------------------------------------------------------------------------
# Pure-JAX reference mirroring the PyTorch module (L matmuls at the same bf16
# precision the kernel uses; everything else f32 at HIGHEST precision).
# ---------------------------------------------------------------------------
def reference_forward(in_feat, laplacians, params, thetas):
    hi = jax.lax.Precision.HIGHEST
    kk = len(thetas)
    h_feats = params["w1"].shape[1]
    h = _leaky(jnp.dot(in_feat, params["w1"], precision=hi) + params["b1"])
    h = _leaky(jnp.dot(h, params["w2"], precision=hi) + params["b2"])
    h_all = jnp.zeros((in_feat.shape[0], h_feats), jnp.float32)
    for l in laplacians:
        l_bf16 = l.astype(jnp.bfloat16)
        feat = h
        powers = [feat]
        for _ in range(kk - 1):
            feat = jnp.dot(l_bf16, feat.astype(jnp.bfloat16),
                           preferred_element_type=jnp.float32)
            powers.append(feat)
        h_final = jnp.concatenate(
            [sum(thetas[t][k] * powers[k] for k in range(kk)) for t in range(kk)], axis=1)
        h = jnp.dot(h_final, params["w3"], precision=hi) + params["b3"]
        h_all = h_all + h
    h_all = _leaky(h_all)
    return jnp.dot(h_all, params["w4"], precision=hi) + params["b4"]


if __name__ == "__main__":
    # Small deterministic shapes consistent with
    # BWGNN_Hetero(in_feats, h_feats, num_classes, graph, d=2).
    N = 300                 # graph nodes (non-multiple of tile to exercise padding)
    IN_FEATS = 32
    H_FEATS = 64
    NUM_CLASSES = 2
    D = 2                   # polynomial order -> K = 3 filters
    NUM_RELATIONS = 2       # canonical edge types of the heterograph

    thetas = calculate_theta2(D)
    K = D + 1

    key = jax.random.PRNGKey(0)
    k_adj, k_x, *k_w = jax.random.split(key, 12)

    # Deterministic random relation graphs (directed adjacency, ~5% density).
    laplacians = []
    for kr in jax.random.split(k_adj, NUM_RELATIONS):
        adj = (jax.random.uniform(kr, (N, N)) < 0.05).astype(jnp.float32)
        laplacians.append(build_laplacian(adj))

    in_feat = jax.random.normal(k_x, (N, IN_FEATS), dtype=jnp.float32)

    def winit(k, fin, fout, gain=0.5):
        return gain / math.sqrt(fin) * jax.random.normal(k, (fin, fout), dtype=jnp.float32)

    params = {
        # weights stored (in, out); biases as (1, out) rows.
        "w1": winit(k_w[0], IN_FEATS, H_FEATS),
        "b1": 0.05 * jax.random.normal(k_w[1], (1, H_FEATS), dtype=jnp.float32),
        "w2": winit(k_w[2], H_FEATS, H_FEATS),
        "b2": 0.05 * jax.random.normal(k_w[3], (1, H_FEATS), dtype=jnp.float32),
        "w3": winit(k_w[4], K * H_FEATS, H_FEATS),
        "b3": 0.05 * jax.random.normal(k_w[5], (1, H_FEATS), dtype=jnp.float32),
        "w4": winit(k_w[6], H_FEATS, NUM_CLASSES),
        "b4": 0.05 * jax.random.normal(k_w[7], (1, NUM_CLASSES), dtype=jnp.float32),
    }

    out = bwgnn_hetero_forward(in_feat, laplacians, params, thetas,
                               tile_m=128, tile_k=128)
    out = jax.block_until_ready(out)

    ref = reference_forward(in_feat, laplacians, params, thetas)
    assert out.shape == (N, NUM_CLASSES)
    max_err = float(jnp.max(jnp.abs(out - ref)))
    assert jnp.allclose(out, ref, atol=2e-2, rtol=2e-2), max_err

    print("KERNEL_OK")
</pallas_src>

<mosaic_0001>
module attributes {stable_mosaic.version = 11 : i64} {
  func.func @_dense_kernel(%arg0: i32, %arg1: memref<128x32xf32, #tpu.memory_space<vmem>>, %arg2: memref<32x64xf32, #tpu.memory_space<vmem>>, %arg3: memref<1x64xf32, #tpu.memory_space<vmem>>, %arg4: memref<128x64xf32, #tpu.memory_space<vmem>>) attributes {dimension_semantics = [#tpu.dimension_semantics<parallel>], iteration_bounds = array<i64: 3>, scalar_prefetch = 0 : i64, scratch_operands = 0 : i64, tpu.core_type = #tpu.core_type<tc>, window_params = [{transform_indices = @transform_0, window_bounds = array<i64: 128, 32>}, {pipeline_mode = #tpu.pipeline_mode<synchronous>, transform_indices = @transform_1, window_bounds = array<i64: 32, 64>}, {pipeline_mode = #tpu.pipeline_mode<synchronous>, transform_indices = @transform_2, window_bounds = array<i64: 1, 64>}, {transform_indices = @transform_3, window_bounds = array<i64: 128, 64>}]} {
    %c0 = arith.constant 0 : index
    %c0_0 = arith.constant 0 : index
    %0 = vector.load %arg1[%c0, %c0_0] : memref<128x32xf32, #tpu.memory_space<vmem>>, vector<128x32xf32>
    %c0_1 = arith.constant 0 : index
    %c0_2 = arith.constant 0 : index
    %1 = vector.load %arg2[%c0_1, %c0_2] : memref<32x64xf32, #tpu.memory_space<vmem>>, vector<32x64xf32>
    %cst = arith.constant dense<0.000000e+00> : vector<128x64xf32>
    %2 = tpu.matmul %0, %1, %cst {dimension_numbers = #tpu.dot_dimension_numbers<[1], [0], [0], [1], [0, 0, 1, 1], [], []>} : vector<128x32xf32>, vector<32x64xf32>, vector<128x64xf32> -> vector<128x64xf32>
    %c0_3 = arith.constant 0 : index
    %c0_4 = arith.constant 0 : index
    %3 = vector.load %arg3[%c0_3, %c0_4] : memref<1x64xf32, #tpu.memory_space<vmem>>, vector<1x64xf32>
    %4 = vector.broadcast %3 : vector<1x64xf32> to vector<128x64xf32>
    %5 = arith.addf %2, %4 : vector<128x64xf32>
    %cst_5 = arith.constant 0.000000e+00 : f32
    %6 = vector.broadcast %cst_5 : f32 to vector<128x64xf32>
    %7 = arith.cmpf ogt, %5, %6 : vector<128x64xf32>
    %cst_6 = arith.constant 0.00999999977 : f32
    %8 = vector.broadcast %cst_6 : f32 to vector<128x64xf32>
    %9 = arith.mulf %8, %5 : vector<128x64xf32>
    %10 = arith.select %7, %5, %9 : vector<128x64xi1>, vector<128x64xf32>
    %c0_7 = arith.constant 0 : index
    %c0_8 = arith.constant 0 : index
    %11 = vector.load %arg4[%c0_7, %c0_8] : memref<128x64xf32, #tpu.memory_space<vmem>>, vector<128x64xf32>
    tpu.vector_store %arg4[%c0_7, %c0_8], %10 {strides = array<i32>} : memref<128x64xf32, #tpu.memory_space<vmem>>, vector<128x64xf32>,
    return
  }
  func.func @transform_0(%arg0: i32) -> (i32, i32) {
    %c0_i32 = arith.constant 0 : i32
    %c0_i32_0 = arith.constant 0 : i32
    return %arg0, %c0_i32 : i32, i32
  }
  func.func @transform_1(%arg0: i32) -> (i32, i32) {
    %c0_i32 = arith.constant 0 : i32
    %c0_i32_0 = arith.constant 0 : i32
    %c0_i32_1 = arith.constant 0 : i32
    return %c0_i32, %c0_i32_0 : i32, i32
  }
  func.func @transform_2(%arg0: i32) -> (i32, i32) {
    %c0_i32 = arith.constant 0 : i32
    %c0_i32_0 = arith.constant 0 : i32
    %c0_i32_1 = arith.constant 0 : i32
    return %c0_i32, %c0_i32_0 : i32, i32
  }
  func.func @transform_3(%arg0: i32) -> (i32, i32) {
    %c0_i32 = arith.constant 0 : i32
    %c0_i32_0 = arith.constant 0 : i32
    return %arg0, %c0_i32 : i32, i32
  }
}

</mosaic_0001>

<llo_original>
// kernel: tpu_custom_call.1
$region0: #{tpu_custom_call.1}
  #allocation0 [shape = 'u32[]', space=smem, size = 0x4, offset = 0x4, fixed_abs, tag = 'smem constant byte address 0x4 - core index']
  #allocation1 [shape = 'u32[144,128]{1,0:T(1,128)}', space=vmem, size = 0x12000, scoped, tag = 'internal scratch']
  %s0 = inlined_call_operand.vmem [shape: f32[384,32], index: 0, kind: input, shape index: {}]
  %s1 = inlined_call_operand.vmem [shape: f32[32,64], index: 1, kind: input, shape index: {}]
  %s2 = inlined_call_operand.vmem [shape: f32[1,64], index: 2, kind: input, shape index: {}]
  %s3 = inlined_call_operand.vmem [shape: f32[384,64], index: 3, kind: output, shape index: {}]
  %s4 = sld [smem:[#allocation0]]
  $region45: #{tpu_custom_call.1} parent=0
    _
  %s6 = ssub.s32 1, %s4
  %s7 = scalar_select 0, %s6, %s4
  loop: start=0, step=1, limit=5
  $region2: #{tpu_custom_call.1} parent=0 // loop_pre_header
    _
  $region3: #{tpu_custom_call.1} parent=0 // loop_header
    %s9 = sphi 0, %s13
    %p10 = scmp.ge.s32.totalorder %s9, 5
    %s19 = sphi 0, %s21
    %s22 = sphi 0, %s19
    %s23 = sphi 0, %s22
    %s39 = sphi 0, %s23
    %s43 = sphi 0, %s43
    %s45 = sphi 0, %s43
    %s46 = sphi 0, %s45
    %s60 = sphi 0, %s46
    %s64 = sphi 0, %s64
    %s66 = sphi 0, %s64
    %s67 = sphi 0, %s66
    %s81 = sphi 0, %s67
    %s87 = sphi 0, %s89
    %s90 = sphi 0, %s87
    %s91 = sphi 0, %s90
    %s107 = sphi 0, %s91
  $region4: #{tpu_custom_call.1} parent=0 // loop_header_branch
    %12 = sbr.rel (%p10) target = $region8
  $region5: #{tpu_custom_call.1} parent=0 // loop_body
    %s14 = ssub.s32 %s9, 1
    %s15 = ssub.s32 %s9, 2
    %s16 = sadd.s32 %s9, 1
    %s17 = ssub.s32 %s9, %s16
    %p18 = scmp.eq.s32.totalorder %s17, 0
    %s20 = sadd.s32 %s19, 1
    %s21 = scalar_select %p18, %s19, %s20
    %p24 = pneg %p18
    %p25 = scmp.eq.s32.totalorder %s9, 2
    %p26 = por %p24, %p25
    %p27 = scmp.ne.s32.totalorder %s19, %s22
    %p28 = scmp.eq.s32.totalorder %s9, 0
    %p29 = por %p27, %p28
    %p30 = scmp.ne.s32.totalorder %s19, %s22
    %p31 = scmp.eq.s32.totalorder %s14, 2
    %p32 = por %p30, %p31
    %p33 = scmp.ne.s32.totalorder %s22, %s23
    %p34 = scmp.eq.s32.totalorder %s14, 0
    %p35 = por %p33, %p34
    %p36 = scmp.ne.s32.totalorder %s22, %s23
    %p37 = scmp.eq.s32.totalorder %s15, 2
    %p38 = por %p36, %p37
    %p40 = scmp.ne.s32.totalorder %s23, %s39
    %p41 = scmp.eq.s32.totalorder %s15, 0
    %p42 = por %p40, %p41
    %s44 = sadd.s32 %s43, 1
    %p47 = scmp.eq.s32.totalorder %s9, 2
    %p48 = scmp.ne.s32.totalorder %s43, %s45
    %p49 = scmp.eq.s32.totalorder %s9, 0
    %p50 = por %p48, %p49
    %p51 = scmp.ne.s32.totalorder %s43, %s45
    %p52 = scmp.eq.s32.totalorder %s14, 2
    %p53 = por %p51, %p52
    %p54 = scmp.ne.s32.totalorder %s45, %s46
    %p55 = scmp.eq.s32.totalorder %s14, 0
    %p56 = por %p54, %p55
    %p57 = scmp.ne.s32.totalorder %s45, %s46
    %p58 = scmp.eq.s32.totalorder %s15, 2
    %p59 = por %p57, %p58
    %p61 = scmp.ne.s32.totalorder %s46, %s60
    %p62 = scmp.eq.s32.totalorder %s15, 0
    %p63 = por %p61, %p62
    %s65 = sadd.s32 %s64, 1
    %p68 = scmp.eq.s32.totalorder %s9, 2
    %p69 = scmp.ne.s32.totalorder %s64, %s66
    %p70 = scmp.eq.s32.totalorder %s9, 0
    %p71 = por %p69, %p70
    %p72 = scmp.ne.s32.totalorder %s64, %s66
    %p73 = scmp.eq.s32.totalorder %s14, 2
    %p74 = por %p72, %p73
    %p75 = scmp.ne.s32.totalorder %s66, %s67
    %p76 = scmp.eq.s32.totalorder %s14, 0
    %p77 = por %p75, %p76
    %p78 = scmp.ne.s32.totalorder %s66, %s67
    %p79 = scmp.eq.s32.totalorder %s15, 2
    %p80 = por %p78, %p79
    %p82 = scmp.ne.s32.totalorder %s67, %s81
    %p83 = scmp.eq.s32.totalorder %s15, 0
    %p84 = por %p82, %p83
    %s85 = ssub.s32 %s9, %s16
    %p86 = scmp.eq.s32.totalorder %s85, 0
    %s88 = sadd.s32 %s87, 1
    %s89 = scalar_select %p86, %s87, %s88
    %p92 = pneg %p86
    %p93 = scmp.eq.s32.totalorder %s9, 2
    %p94 = por %p92, %p93
    %p95 = scmp.ne.s32.totalorder %s87, %s90
    %p96 = scmp.eq.s32.totalorder %s9, 0
    %p97 = por %p95, %p96
    %p98 = scmp.ne.s32.totalorder %s87, %s90
    %p99 = scmp.eq.s32.totalorder %s14, 2
    %p100 = por %p98, %p99
    %p101 = scmp.ne.s32.totalorder %s90, %s91
    %p102 = scmp.eq.s32.totalorder %s14, 0
    %p103 = por %p101, %p102
    %p104 = scmp.ne.s32.totalorder %s90, %s91
    %p105 = scmp.eq.s32.totalorder %s15, 2
    %p106 = por %p104, %p105
    %p108 = scmp.ne.s32.totalorder %s91, %s107
    %p109 = scmp.eq.s32.totalorder %s15, 0
    %p110 = por %p108, %p109
    %p111 = scmp.le.s32.totalorder 1, %s9
    %p112 = scmp.lt.s32.totalorder %s9, 4
    %p113 = pnand %p111, %p112
    %p114 = pneg %p113
    // Predicated region
    $region9: #{tpu_custom_call.1} parent=5 // pred_check
      _
    $region10: #{tpu_custom_call.1} parent=5 // pred_check_branch
      %116 = sbr.rel (%p113) target = $region12
    $region11: #{tpu_custom_call.1} parent=5 // pred_region
      %s117 = ssub.s32 %s9, 1
      // Predicated region
      $region13: #{tpu_custom_call.1} parent=11 // pred_check
        %p118 = pneg %p56
      $region14: #{tpu_custom_call.1} parent=11 // pred_check_branch
        %120 = sbr.rel (%p118) target = $region16
      $region15: #{tpu_custom_call.1} parent=11 // pred_region
        _
      $region16: #{tpu_custom_call.1} parent=11 // pred_fallthru
        _
      // Predicated region
      $region17: #{tpu_custom_call.1} parent=11 // pred_check
        %p121 = pneg %p77
      $region18: #{tpu_custom_call.1} parent=11 // pred_check_branch
        %123 = sbr.rel (%p121) target = $region20
      $region19: #{tpu_custom_call.1} parent=11 // pred_region
        _
      $region20: #{tpu_custom_call.1} parent=11 // pred_fallthru
        _
    $region12: #{tpu_custom_call.1} parent=5 // pred_fallthru
      _
    %p124 = scmp.lt.s32.totalorder %s9, 3
    // Predicated region
    $region21: #{tpu_custom_call.1} parent=5 // pred_check
      %p125 = pneg %p124
    $region22: #{tpu_custom_call.1} parent=5 // pred_check_branch
      %127 = sbr.rel (%p125) target = $region24
    $region23: #{tpu_custom_call.1} parent=5 // pred_region
      // Predicated region
      $region25: #{tpu_custom_call.1} parent=23 // pred_check
        %p128 = pneg %p29
      $region26: #{tpu_custom_call.1} parent=23 // pred_check_branch
        %130 = sbr.rel (%p128) target = $region28
      $region27: #{tpu_custom_call.1} parent=23 // pred_region
        %s131 = smul.u32 16, %s9
        %p132 = scmp.lt.s32.totalorder %s131, 47
        %s133 = scalar_select %p132, %s131, 47
        %s134 = smul.addr %s133, 8
        %s135 = scalar_lea.vmem %s0, %s134
        %s136 = smul.u32 16, %s9
      $region28: #{tpu_custom_call.1} parent=23 // pred_fallthru
        _
    $region24: #{tpu_custom_call.1} parent=5 // pred_fallthru
      _
    %p137 = scmp.le.s32.totalorder 1, %s9
    %p138 = scmp.lt.s32.totalorder %s9, 4
    %p139 = pnand %p137, %p138
    %p140 = pneg %p139
    // Predicated region
    $region29: #{tpu_custom_call.1} parent=5 // pred_check
      _
    $region30: #{tpu_custom_call.1} parent=5 // pred_check_branch
      %142 = sbr.rel (%p139) target = $region32
    $region31: #{tpu_custom_call.1} parent=5 // pred_region
      %s143 = ssub.s32 %s9, 1
      %s144 = smul.u32 16, %s14
      %p145 = scmp.lt.s32.totalorder %s144, 47
      %s146 = scalar_select %p145, %s144, 47
      %s147 = smul.addr %s146, 8
      %s148 = scalar_lea.vmem %s0, %s147
      %p149 = pneg %p35
      %p150 = pneg %p32
      %p151 = pneg %p56
      %p152 = pneg %p53
      %p153 = pneg %p77
      %p154 = pneg %p74
      %p155 = pneg %p103
      %p156 = pneg %p100
      %s157 = smul.u32 16, %s14
      %p158 = scmp.lt.s32.totalorder %s157, 47
      %s159 = scalar_select %p158, %s157, 47
      %s160 = smul.addr %s159, 8
      %s161 = scalar_lea.vmem %s3, %s160
      %s162 = smul.u32 16, %s14
      %p163 = scmp.lt.s32.totalorder %s162, 47
      %s164 = scalar_select %p163, %s162, 47
      %s165 = smul.addr %s164, 8
      %s166 = scalar_lea.vmem %s0, %s165
      %s167 = smul.u32 16, %s14
      %s168 = smul.u32 16, %s14
      %p169 = scmp.lt.s32.totalorder %s168, 47
      %s170 = scalar_select %p169, %s168, 47
      %s171 = smul.addr %s170, 8
      %s172 = scalar_lea.vmem %s3, %s171
      %s173 = smul.u32 16, %s14
      %v174 = vld [vmem:[%s166] sm:$0xff]
      %v175 = vld [vmem:[%s166 + $0x8] sm:$0xff]
      %v176 = vld [vmem:[%s166 + $0x10] sm:$0xff]
      %v177 = vld [vmem:[%s166 + $0x18] sm:$0xff]
      %v178 = vld [vmem:[%s166 + $0x20] sm:$0xff]
      %v179 = vld [vmem:[%s166 + $0x28] sm:$0xff]
      %v180 = vld [vmem:[%s166 + $0x30] sm:$0xff]
      %v181 = vld [vmem:[%s166 + $0x38] sm:$0xff]
      %v182 = vld [vmem:[%s166 + $0x40] sm:$0xff]
      %v183 = vld [vmem:[%s166 + $0x48] sm:$0xff]
      %v184 = vld [vmem:[%s166 + $0x50] sm:$0xff]
      %v185 = vld [vmem:[%s166 + $0x58] sm:$0xff]
      %v186 = vld [vmem:[%s166 + $0x60] sm:$0xff]
      %v187 = vld [vmem:[%s166 + $0x68] sm:$0xff]
      %v188 = vld [vmem:[%s166 + $0x70] sm:$0xff]
      %v189 = vld [vmem:[%s166 + $0x78] sm:$0xff]
      %v190 = vld [vmem:[%s1] sm:$0xff]
      %v191 = vld [vmem:[%s1 + $0x8] sm:$0xff]
      %v192 = vld [vmem:[%s1 + $0x10] sm:$0xff]
      %v193 = vld [vmem:[%s1 + $0x18] sm:$0xff]
      %v194 = vld [vmem:[%s2] sm:$0x1]
      %v196 = vlaneseq
      %v197 = vshrl.u32 %v196, 7
      %v198 = vsub.s32 0, %v197
      %v199 = vrot.slane %v194, %v198
      %vm201 = vcmask 261120
      %v203 = vsel %vm201, %v174, 0
      %v206 = vsel %vm201, %v175, 0
      %v209 = vsel %vm201, %v176, 0
      %v212 = vsel %vm201, %v177, 0
      %v215 = vsel %vm201, %v178, 0
      %v218 = vsel %vm201, %v179, 0
      %v221 = vsel %vm201, %v180, 0
      %v224 = vsel %vm201, %v181, 0
      %v227 = vsel %vm201, %v182, 0
      %v230 = vsel %vm201, %v183, 0
      %v233 = vsel %vm201, %v184, 0
      %v236 = vsel %vm201, %v185, 0
      %v239 = vsel %vm201, %v186, 0
      %v242 = vsel %vm201, %v187, 0
      %v245 = vsel %vm201, %v188, 0
      %v248 = vsel %vm201, %v189, 0
      %250 = vmatprep.subr.mxu0 0.0
      %251 = vmatpush1.msra.mxu0 0.0
      %252 = vmatprep.subr.mxu0 0.0
      %253 = vmatpush1.msra.mxu0 0.0
      %254 = vmatprep.subr.mxu0 0.0
      %255 = vmatpush1.msra.mxu0 0.0
      %256 = vmatprep.subr.mxu0 0.0
      %257 = vmatpush1.msra.mxu0 0.0
      %258 = vmatprep.subr.mxu0 0.0
      %259 = vmatpush1.msra.mxu0 0.0
      %260 = vmatprep.subr.mxu0 0.0
      %261 = vmatpush1.msra.mxu0 0.0
      %262 = vmatprep.subr.mxu0 0.0
      %263 = vmatpush1.msra.mxu0 0.0
      %264 = vmatprep.subr.mxu0 0.0
      %265 = vmatpush1.msra.mxu0 0.0
      %266 = vmatprep.subr.mxu0 0.0
      %267 = vmatpush1.msra.mxu0 0.0
      %268 = vmatprep.subr.mxu0 0.0
      %269 = vmatpush1.msra.mxu0 0.0
      %270 = vmatprep.subr.mxu0 0.0
      %271 = vmatpush1.msra.mxu0 0.0
      %272 = vmatprep.subr.mxu0 0.0
      %273 = vmatpush1.msra.mxu0 0.0
      %274 = vmatprep.subr.mxu0 0.0
      %275 = vmatpush1.msra.mxu0 %v193
      %276 = vmatprep.subr.mxu0 0.0
      %277 = vmatpush1.msra.mxu0 %v192
      %278 = vmatprep.subr.mxu0 0.0
      %279 = vmatpush1.msra.mxu0 %v191
      %280 = vmatprep.subr.mxu0 0.0
      %281 = vmatpush1.msra.mxu0 %v190
      %282 = vmatprep.subr.mxu0 0.0
      %283 = vmatpush2.msra.mxu0 0.0
      %284 = vmatprep.subr.mxu0 0.0
      %285 = vmatpush2.msra.mxu0 0.0
      %286 = vmatprep.subr.mxu0 0.0
      %287 = vmatpush2.msra.mxu0 0.0
      %288 = vmatprep.subr.mxu0 0.0
      %289 = vmatpush2.msra.mxu0 0.0
      %290 = vmatprep.subr.mxu0 0.0
      %291 = vmatpush2.msra.mxu0 0.0
      %292 = vmatprep.subr.mxu0 0.0
      %293 = vmatpush2.msra.mxu0 0.0
      %294 = vmatprep.subr.mxu0 0.0
      %295 = vmatpush2.msra.mxu0 0.0
      %296 = vmatprep.subr.mxu0 0.0
      %297 = vmatpush2.msra.mxu0 0.0
      %298 = vmatprep.subr.mxu0 0.0
      %299 = vmatpush2.msra.mxu0 0.0
      %300 = vmatprep.subr.mxu0 0.0
      %301 = vmatpush2.msra.mxu0 0.0
      %302 = vmatprep.subr.mxu0 0.0
      %303 = vmatpush2.msra.mxu0 0.0
      %304 = vmatprep.subr.mxu0 0.0
      %305 = vmatpush2.msra.mxu0 0.0
      %306 = vmatprep.subr.mxu0 0.0
      %307 = vmatpush2.msra.mxu0 0.0
      %308 = vmatprep.subr.mxu0 0.0
      %309 = vmatpush2.msra.mxu0 0.0
      %310 = vmatprep.subr.mxu0 0.0
      %311 = vmatpush2.msra.mxu0 0.0
      %312 = vmatprep.subr.mxu0 0.0
      %313 = vmatpush2.msra.mxu0 0.0
      %314 = vmatprep.mubr.f32.mxu0 0.0
      %315 = vmatmul.mubr.f32.gmra.mxu0 %v203
      %v316 = vpop.f32.mrf.mxu0
      %v317 = vadd.f32 %v199, %v316
      %v318 = vpop.f32.mrf.mxu0
      %319 = vmatprep.mubr.f32.mxu0 0.0
      %320 = vmatmul.mubr.f32.gmra.mxu0 %v206
      %v321 = vpop.f32.mrf.mxu0
      %v322 = vadd.f32 %v199, %v321
      %v323 = vpop.f32.mrf.mxu0
      %324 = vmatprep.mubr.f32.mxu0 0.0
      %325 = vmatmul.mubr.f32.gmra.mxu0 %v209
      %v326 = vpop.f32.mrf.mxu0
      %v327 = vadd.f32 %v199, %v326
      %v328 = vpop.f32.mrf.mxu0
      %329 = vmatprep.mubr.f32.mxu0 0.0
      %330 = vmatmul.mubr.f32.gmra.mxu0 %v212
      %v331 = vpop.f32.mrf.mxu0
      %v332 = vadd.f32 %v199, %v331
      %v333 = vpop.f32.mrf.mxu0
      %334 = vmatprep.mubr.f32.mxu0 0.0
      %335 = vmatmul.mubr.f32.gmra.mxu0 %v215
      %v336 = vpop.f32.mrf.mxu0
      %v337 = vadd.f32 %v199, %v336
      %v338 = vpop.f32.mrf.mxu0
      %339 = vmatprep.mubr.f32.mxu0 0.0
      %340 = vmatmul.mubr.f32.gmra.mxu0 %v218
      %v341 = vpop.f32.mrf.mxu0
      %v342 = vadd.f32 %v199, %v341
      %v343 = vpop.f32.mrf.mxu0
      %344 = vmatprep.mubr.f32.mxu0 0.0
      %345 = vmatmul.mubr.f32.gmra.mxu0 %v221
      %v346 = vpop.f32.mrf.mxu0
      %v347 = vadd.f32 %v199, %v346
      %v348 = vpop.f32.mrf.mxu0
      %349 = vmatprep.mubr.f32.mxu0 0.0
      %350 = vmatmul.mubr.f32.gmra.mxu0 %v224
      %v351 = vpop.f32.mrf.mxu0
      %v352 = vadd.f32 %v199, %v351
      %v353 = vpop.f32.mrf.mxu0
      %354 = vmatprep.mubr.f32.mxu0 0.0
      %355 = vmatmul.mubr.f32.gmra.mxu0 %v227
      %v356 = vpop.f32.mrf.mxu0
      %v357 = vadd.f32 %v199, %v356
      %v358 = vpop.f32.mrf.mxu0
      %359 = vmatprep.mubr.f32.mxu0 0.0
      %360 = vmatmul.mubr.f32.gmra.mxu0 %v230
      %v361 = vpop.f32.mrf.mxu0
      %v362 = vadd.f32 %v199, %v361
      %v363 = vpop.f32.mrf.mxu0
      %364 = vmatprep.mubr.f32.mxu0 0.0
      %365 = vmatmul.mubr.f32.gmra.mxu0 %v233
      %v366 = vpop.f32.mrf.mxu0
      %v367 = vadd.f32 %v199, %v366
      %v368 = vpop.f32.mrf.mxu0
      %369 = vmatprep.mubr.f32.mxu0 0.0
      %370 = vmatmul.mubr.f32.gmra.mxu0 %v236
      %v371 = vpop.f32.mrf.mxu0
      %v372 = vadd.f32 %v199, %v371
      %v373 = vpop.f32.mrf.mxu0
      %374 = vmatprep.mubr.f32.mxu0 0.0
      %375 = vmatmul.mubr.f32.gmra.mxu0 %v239
      %v376 = vpop.f32.mrf.mxu0
      %v377 = vadd.f32 %v199, %v376
      %v378 = vpop.f32.mrf.mxu0
      %379 = vmatprep.mubr.f32.mxu0 0.0
      %380 = vmatmul.mubr.f32.gmra.mxu0 %v242
      %v381 = vpop.f32.mrf.mxu0
      %v382 = vadd.f32 %v199, %v381
      %v383 = vpop.f32.mrf.mxu0
      %384 = vmatprep.mubr.f32.mxu0 0.0
      %385 = vmatmul.mubr.f32.gmra.mxu0 %v245
      %v386 = vpop.f32.mrf.mxu0
      %v387 = vadd.f32 %v199, %v386
      %v388 = vpop.f32.mrf.mxu0
      %389 = vmatprep.mubr.f32.mxu0 0.0
      %390 = vmatmul.mubr.f32.gmra.mxu0 %v248
      %v391 = vpop.f32.mrf.mxu0
      %v392 = vadd.f32 %v199, %v391
      %v393 = vpop.f32.mrf.mxu0
      %394 = vdwg.mxu0
      %vm395 = vcmp.gt.f32.partialorder %v317, 0.0
      %vm396 = vcmp.gt.f32.partialorder %v322, 0.0
      %vm397 = vcmp.gt.f32.partialorder %v327, 0.0
      %vm398 = vcmp.gt.f32.partialorder %v332, 0.0
      %vm399 = vcmp.gt.f32.partialorder %v337, 0.0
      %vm400 = vcmp.gt.f32.partialorder %v342, 0.0
      %vm401 = vcmp.gt.f32.partialorder %v347, 0.0
      %vm402 = vcmp.gt.f32.partialorder %v352, 0.0
      %vm403 = vcmp.gt.f32.partialorder %v357, 0.0
      %vm404 = vcmp.gt.f32.partialorder %v362, 0.0
      %vm405 = vcmp.gt.f32.partialorder %v367, 0.0
      %vm406 = vcmp.gt.f32.partialorder %v372, 0.0
      %vm407 = vcmp.gt.f32.partialorder %v377, 0.0
      %vm408 = vcmp.gt.f32.partialorder %v382, 0.0
      %vm409 = vcmp.gt.f32.partialorder %v387, 0.0
      %vm410 = vcmp.gt.f32.partialorder %v392, 0.0
      %v411 = vmul.f32 %v317, 0.01
      %v412 = vmul.f32 %v322, 0.01
      %v413 = vmul.f32 %v327, 0.01
      %v414 = vmul.f32 %v332, 0.01
      %v415 = vmul.f32 %v337, 0.01
      %v416 = vmul.f32 %v342, 0.01
      %v417 = vmul.f32 %v347, 0.01
      %v418 = vmul.f32 %v352, 0.01
      %v419 = vmul.f32 %v357, 0.01
      %v420 = vmul.f32 %v362, 0.01
      %v421 = vmul.f32 %v367, 0.01
      %v422 = vmul.f32 %v372, 0.01
      %v423 = vmul.f32 %v377, 0.01
      %v424 = vmul.f32 %v382, 0.01
      %v425 = vmul.f32 %v387, 0.01
      %v426 = vmul.f32 %v392, 0.01
      %v427 = vsel %vm395, %v317, %v411
      %v428 = vsel %vm396, %v322, %v412
      %v429 = vsel %vm397, %v327, %v413
      %v430 = vsel %vm398, %v332, %v414
      %v431 = vsel %vm399, %v337, %v415
      %v432 = vsel %vm400, %v342, %v416
      %v433 = vsel %vm401, %v347, %v417
      %v434 = vsel %vm402, %v352, %v418
      %v435 = vsel %vm403, %v357, %v419
      %v436 = vsel %vm404, %v362, %v420
      %v437 = vsel %vm405, %v367, %v421
      %v438 = vsel %vm406, %v372, %v422
      %v439 = vsel %vm407, %v377, %v423
      %v440 = vsel %vm408, %v382, %v424
      %v441 = vsel %vm409, %v387, %v425
      %v442 = vsel %vm410, %v392, %v426
      %vm443 = vcmask 523264
      %444 = vst.msk [vmem:[%s172] sm:$0xff] %vm443, %v427
      %445 = vst.msk [vmem:[%s172 + $0x8] sm:$0xff] %vm443, %v428
      %446 = vst.msk [vmem:[%s172 + $0x10] sm:$0xff] %vm443, %v429
      %447 = vst.msk [vmem:[%s172 + $0x18] sm:$0xff] %vm443, %v430
      %448 = vst.msk [vmem:[%s172 + $0x20] sm:$0xff] %vm443, %v431
      %449 = vst.msk [vmem:[%s172 + $0x28] sm:$0xff] %vm443, %v432
      %450 = vst.msk [vmem:[%s172 + $0x30] sm:$0xff] %vm443, %v433
      %451 = vst.msk [vmem:[%s172 + $0x38] sm:$0xff] %vm443, %v434
      %452 = vst.msk [vmem:[%s172 + $0x40] sm:$0xff] %vm443, %v435
      %453 = vst.msk [vmem:[%s172 + $0x48] sm:$0xff] %vm443, %v436
      %454 = vst.msk [vmem:[%s172 + $0x50] sm:$0xff] %vm443, %v437
      %455 = vst.msk [vmem:[%s172 + $0x58] sm:$0xff] %vm443, %v438
      %456 = vst.msk [vmem:[%s172 + $0x60] sm:$0xff] %vm443, %v439
      %457 = vst.msk [vmem:[%s172 + $0x68] sm:$0xff] %vm443, %v440
      %458 = vst.msk [vmem:[%s172 + $0x70] sm:$0xff] %vm443, %v441
      %459 = vst.msk [vmem:[%s172 + $0x78] sm:$0xff] %vm443, %v442
      %s460 = smul.u32 16, %s14
      %p461 = scmp.lt.s32.totalorder %s460, 47
      %s462 = scalar_select %p461, %s460, 47
      %s463 = smul.addr %s462, 8
      %s464 = scalar_lea.vmem %s3, %s463
      // Predicated region
      $region33: #{tpu_custom_call.1} parent=31 // pred_check
        %p465 = pneg %p100
      $region34: #{tpu_custom_call.1} parent=31 // pred_check_branch
        %467 = sbr.rel (%p465) target = $region36
      $region35: #{tpu_custom_call.1} parent=31 // pred_region
        %s468 = smul.u32 16, %s14
      $region36: #{tpu_custom_call.1} parent=31 // pred_fallthru
        _
    $region32: #{tpu_custom_call.1} parent=5 // pred_fallthru
      _
    %p469 = scmp.le.s32.totalorder 2, %s9
    // Predicated region
    $region37: #{tpu_custom_call.1} parent=5 // pred_check
      %p470 = pneg %p469
    $region38: #{tpu_custom_call.1} parent=5 // pred_check_branch
      %472 = sbr.rel (%p470) target = $region40
    $region39: #{tpu_custom_call.1} parent=5 // pred_region
      %s473 = ssub.s32 %s9, 2
      // Predicated region
      $region41: #{tpu_custom_call.1} parent=39 // pred_check
        %p474 = pneg %p106
      $region42: #{tpu_custom_call.1} parent=39 // pred_check_branch
        %476 = sbr.rel (%p474) target = $region44
      $region43: #{tpu_custom_call.1} parent=39 // pred_region
        %s477 = smul.u32 16, %s15
        %p478 = scmp.lt.s32.totalorder %s477, 47
        %s479 = scalar_select %p478, %s477, 47
        %s480 = smul.addr %s479, 8
        %s481 = scalar_lea.vmem %s3, %s480
      $region44: #{tpu_custom_call.1} parent=39 // pred_fallthru
        _
    $region40: #{tpu_custom_call.1} parent=5 // pred_fallthru
      _
  $region6: #{tpu_custom_call.1} parent=0 // loop_footer
    %s13 = sadd.s32 1, %s9
  $region7: #{tpu_custom_call.1} parent=0 // loop_footer_branch
    %8 = sbr.rel target = $region3
  $region8: #{tpu_custom_call.1} parent=0 // loop_exit
    _

</llo_original>
